<compile_context>
chip_gen: v5e
topology: v5e:2x2
jax: 0.10.0
libtpu: 0.0.40
codegen_flags: <defaults>
</compile_context>

<pallas_src>
import functools

import jax
import jax.numpy as jnp
from jax.experimental import pallas as pl
from jax.experimental.pallas import tpu as pltpu


def _round_up(a, m):
    return (a + m - 1) // m * m


# ----------------------------- Pallas kernel --------------------------------
def _corr_vae_kernel(
    x_ref, y_ref, emb_ref, type_ref, eps_ref,
    w1_ref, b1_ref,
    w2h_ref, w2t_ref, b2_ref,
    w3_ref, b3_ref,
    w4_ref, b4_ref,
    part_ref, recon_ref, emby_ref,
    *, latent_dim, batch, tile_b, matmul_dtype,
):
    dt = matmul_dtype
    L = latent_dim

    emb = emb_ref[...]          # (1 or TB, F*E)  flattened gene-embedding slab
    x_rep = x_ref[...]          # (TB, F*E)       x pre-repeated along E
    y_rep = y_ref[...]          # (TB, F*E)

    # ---------------- encode ----------------
    emb_x = x_rep * emb                                              # lane-dense
    h1 = jnp.maximum(
        jnp.dot(emb_x.astype(dt), w1_ref[...].astype(dt),
                preferred_element_type=jnp.float32) + b1_ref[...],
        0.0)                                                         # (TB, H)

    # Fused fc2_mu / fc2_logvar over concat(h1, emb_type):
    # one dot over h1 and one over the type embedding, 2L output lanes.
    mulv = (
        jnp.dot(h1.astype(dt), w2h_ref[...].astype(dt),
                preferred_element_type=jnp.float32)
        + jnp.dot(type_ref[...].astype(dt), w2t_ref[...].astype(dt),
                  preferred_element_type=jnp.float32)
        + b2_ref[...])                                               # (TB, 2L)
    mu = mulv[:, :L]
    logvar = jnp.clip(mulv[:, L:2 * L], -10.0, 10.0)

    # ---------------- reparameterize ----------------
    std = jnp.exp(0.5 * logvar)
    z = mu + eps_ref[...] * std                                      # (TB, L)

    # ---------------- decode ----------------
    h3 = jnp.maximum(
        jnp.dot(z.astype(dt), w3_ref[...].astype(dt),
                preferred_element_type=jnp.float32) + b3_ref[...],
        0.0)                                                         # (TB, H)
    # TODO(synk): original decode() also runs a host-side numpy dot on detached
    # tensors whose result is discarded; intentionally omitted.

    # fc4 with columns pre-repeated E times -> h4 already broadcast along the
    # embedding axis, stays lane-dense (TB, F*E).
    h4_rep = (jnp.dot(h3.astype(dt), w4_ref[...].astype(dt),
                      preferred_element_type=jnp.float32) + b4_ref[...])

    recon_y = h4_rep * emb
    emb_y = y_rep * emb
    recon_ref[...] = recon_y
    emby_ref[...] = emb_y

    # ---------------- per-tile loss partial sums ----------------
    # Mask rows that only exist because the batch was padded up to a tile
    # multiple (no-op when B == B_pad).
    rows = (jax.lax.broadcasted_iota(jnp.int32, (tile_b, 1), 0)
            + pl.program_id(0) * tile_b)
    valid = (rows < batch).astype(jnp.float32)

    diff = recon_y - emb_y
    sse = jnp.sum(valid * diff * diff, axis=(0, 1), keepdims=True)   # (1, 1)
    # exp(logvar) == std * std : reuse std, one fewer EUP transcendental.
    kld = -0.5 * jnp.sum(valid * (1.0 + logvar - mu * mu - std * std),
                         axis=(0, 1), keepdims=True)                 # (1, 1)

    # Unmasked full-vreg store: lane 0 = SSE, lane 1 = KLD, rest 0.
    lane = jax.lax.broadcasted_iota(jnp.int32, (8, 128), 1)
    part_ref[0] = jnp.where(lane == 0, sse, jnp.where(lane == 1, kld, 0.0))


# ----------------------------- wrapper ---------------------------------------
def corr_vae_forward(x, y, data_type, gene_feats, eps, params, *,
                     matmul_dtype=jnp.float32, shared_gene_feats=False):
    """Fused CorrVAE forward (training mode).

    Returns (scalar loss, recon_y[B, F*E], emb_y[B, F*E]).

    shared_gene_feats=True assumes every row of gene_feats is identical (the
    training harness always feeds arange(n_feats)); the embedding slab is then
    DMA'd once instead of per row.
    """
    B, F = x.shape
    E = params["gene_embedding"].shape[1]
    FE = F * E
    H = params["w1"].shape[1]
    L = params["w3"].shape[0]
    TE = params["type_embedding"].shape[1]

    # ---- glue (plain JAX): embedding gathers + lane-dense flattening ----
    if shared_gene_feats:
        emb_flat = jnp.take(params["gene_embedding"], gene_feats[0],
                            axis=0).reshape(1, FE)                    # (1, F*E)
    else:
        emb_flat = jnp.take(params["gene_embedding"], gene_feats,
                            axis=0).reshape(B, FE)                    # (B, F*E)
    emb_type = jnp.take(params["type_embedding"], data_type, axis=0)  # (B, TE)
    x_rep = jnp.repeat(x, E, axis=1)                                  # (B, F*E)
    y_rep = jnp.repeat(y, E, axis=1)                                  # (B, F*E)

    # Fused fc2 weights and column-repeated fc4 weights.  (In a training loop
    # these one-time transforms should be precomputed outside the step.)
    w2_h = jnp.concatenate([params["w2mu_h"], params["w2lv_h"]], axis=1)   # (H, 2L)
    w2_t = jnp.concatenate([params["w2mu_t"], params["w2lv_t"]], axis=1)   # (TE, 2L)
    b2 = jnp.concatenate([params["b2mu"], params["b2lv"]], axis=1)         # (1, 2L)
    w4_rep = jnp.repeat(params["w4"], E, axis=1)                           # (H, F*E)
    b4_rep = jnp.repeat(params["b4"], E, axis=1)                           # (1, F*E)

    # ---- batch tiling (grid over batch; weights stay VMEM-resident) ----
    TB = 128 if B > 128 else _round_up(B, 8)        # sublane-aligned tile
    n_tiles = pl.cdiv(B, TB)
    B_pad = n_tiles * TB

    def pad_b(a):
        if a.shape[0] == B_pad:
            return a
        return jnp.pad(a, ((0, B_pad - a.shape[0]), (0, 0)))

    x_rep, y_rep, emb_type_p, eps_p = map(pad_b, (x_rep, y_rep, emb_type, eps))
    emb_in = emb_flat if shared_gene_feats else pad_b(emb_flat)

    tile_map = lambda i: (i, 0)
    const_map = lambda i: (0, 0)
    emb_rows = 1 if shared_gene_feats else TB
    emb_map = const_map if shared_gene_feats else tile_map

    in_specs = [
        pl.BlockSpec((TB, FE), tile_map),        # x_rep
        pl.BlockSpec((TB, FE), tile_map),        # y_rep
        pl.BlockSpec((emb_rows, FE), emb_map),   # emb_flat
        pl.BlockSpec((TB, TE), tile_map),        # emb_type
        pl.BlockSpec((TB, L), tile_map),         # eps
        pl.BlockSpec((FE, H), const_map),        # w1   (resident across tiles)
        pl.BlockSpec((1, H), const_map),         # b1
        pl.BlockSpec((H, 2 * L), const_map),     # w2_h (fused mu|logvar)
        pl.BlockSpec((TE, 2 * L), const_map),    # w2_t
        pl.BlockSpec((1, 2 * L), const_map),     # b2
        pl.BlockSpec((L, H), const_map),         # w3
        pl.BlockSpec((1, H), const_map),         # b3
        pl.BlockSpec((H, FE), const_map),        # w4_rep
        pl.BlockSpec((1, FE), const_map),        # b4_rep
    ]
    out_shapes = (
        jax.ShapeDtypeStruct((n_tiles, 8, 128), jnp.float32),  # [SSE, KLD] per tile
        jax.ShapeDtypeStruct((B_pad, FE), jnp.float32),        # recon_y
        jax.ShapeDtypeStruct((B_pad, FE), jnp.float32),        # emb_y
    )
    out_specs = (
        pl.BlockSpec((1, 8, 128), lambda i: (i, 0, 0)),
        pl.BlockSpec((TB, FE), tile_map),
        pl.BlockSpec((TB, FE), tile_map),
    )

    kernel = functools.partial(
        _corr_vae_kernel,
        latent_dim=L, batch=B, tile_b=TB, matmul_dtype=matmul_dtype)

    # TODO(synk): at production sizes on v7x (64 MiB VMEM), tile the K=F*E axis
    # of w1 as a grid reduction instead of keeping it fully resident.
    parts, recon_y, emb_y = pl.pallas_call(
        kernel,
        out_shape=out_shapes,
        grid=(n_tiles,),
        in_specs=in_specs,
        out_specs=out_specs,
        compiler_params=pltpu.CompilerParams(
            dimension_semantics=("parallel",)),
    )(x_rep, y_rep, emb_in, emb_type_p, eps_p,
      params["w1"], params["b1"], w2_h, w2_t, b2,
      params["w3"], params["b3"], w4_rep, b4_rep)

    recon_loss = jnp.sum(parts[:, 0, 0]) / jnp.float32(B * FE)   # MSE (mean)
    kld = jnp.sum(parts[:, 0, 1])
    loss = recon_loss + kld / jnp.float32(B * L)                 # / logvar.numel()
    return loss, recon_y[:B], emb_y[:B]


# ----------------------------- reference (pure JAX) ---------------------------
def corr_vae_forward_ref(x, y, data_type, gene_feats, eps, params, *,
                         matmul_dtype=jnp.float32):
    dt = matmul_dtype
    B, F = x.shape
    emb_feat = jnp.take(params["gene_embedding"], gene_feats, axis=0)
    emb_type = jnp.take(params["type_embedding"], data_type, axis=0)
    E = emb_feat.shape[-1]

    def dot(a, w):
        return jnp.dot(a.astype(dt), w.astype(dt),
                       preferred_element_type=jnp.float32)

    emb_x = (x[:, :, None] * emb_feat).reshape(B, F * E)
    h1 = jax.nn.relu(dot(emb_x, params["w1"]) + params["b1"])
    mu = dot(h1, params["w2mu_h"]) + dot(emb_type, params["w2mu_t"]) + params["b2mu"]
    logvar = dot(h1, params["w2lv_h"]) + dot(emb_type, params["w2lv_t"]) + params["b2lv"]
    logvar = jnp.clip(logvar, -10.0, 10.0)
    z = mu + eps * jnp.exp(0.5 * logvar)
    h3 = jax.nn.relu(dot(z, params["w3"]) + params["b3"])
    h4 = dot(h3, params["w4"]) + params["b4"]
    recon_y = (h4[:, :, None] * emb_feat).reshape(B, F * E)
    emb_y = (y[:, :, None] * emb_feat).reshape(B, F * E)
    recon = jnp.mean((recon_y - emb_y) ** 2)
    kld = -0.5 * jnp.sum(1.0 + logvar - mu**2 - jnp.exp(logvar))
    return recon + kld / mu.size, recon_y, emb_y


# ----------------------------- param init ------------------------------------
def init_params(key, *, hidden_dim, latent_dim, embedding_dim, n_feats,
                type_embedding_dim, n_types):
    ks = jax.random.split(key, 16)

    def w(k, shape, scale=0.1):
        return (scale * jax.random.normal(k, shape)).astype(jnp.float32)

    H, L, E, F, TE, T = (hidden_dim, latent_dim, embedding_dim,
                         n_feats, type_embedding_dim, n_types)
    return {
        # Linear weights stored pre-transposed (in_dim, out_dim).
        "w1": w(ks[0], (F * E, H)),
        "b1": w(ks[1], (1, H)),
        # fc2_mu / fc2_logvar weight split into [hidden part | type-emb part].
        "w2mu_h": w(ks[2], (H, L)),
        "w2mu_t": w(ks[3], (TE, L)),
        "b2mu": w(ks[4], (1, L)),
        "w2lv_h": w(ks[5], (H, L)),
        "w2lv_t": w(ks[6], (TE, L)),
        "b2lv": w(ks[7], (1, L)),
        "w3": w(ks[8], (L, H)),
        "b3": w(ks[9], (1, H)),
        "w4": w(ks[10], (H, F)),
        "b4": w(ks[11], (1, F)),
        "gene_embedding": w(ks[12], (F, E), 1.0),
        "type_embedding": w(ks[13], (T, TE), 1.0),
    }


# ----------------------------- main -------------------------------------------
if __name__ == "__main__":
    B = 2            # batch
    F = 8            # n_feats
    E = 16           # embedding_dim   (F*E = 128 -> lane-dense)
    H = 32           # hidden_dim
    L = 8            # latent_dim
    TE = 8           # type_embedding_dim
    T = 4            # n_types

    key = jax.random.PRNGKey(0)
    k_par, k_x, k_y, k_t, k_eps = jax.random.split(key, 5)

    params = init_params(k_par, hidden_dim=H, latent_dim=L, embedding_dim=E,
                         n_feats=F, type_embedding_dim=TE, n_types=T)

    x = jax.random.normal(k_x, (B, F), dtype=jnp.float32)
    y = jax.random.normal(k_y, (B, F), dtype=jnp.float32)
    data_type = jax.random.randint(k_t, (B,), 0, T)
    gene_feats = jnp.broadcast_to(jnp.arange(F, dtype=jnp.int32), (B, F))
    eps = jax.random.normal(k_eps, (B, L), dtype=jnp.float32)  # torch.randn_like

    fwd = jax.jit(corr_vae_forward,
                  static_argnames=("matmul_dtype", "shared_gene_feats"))

    # Reference (full f32).
    ref_loss, ref_recon, ref_emb = corr_vae_forward_ref(
        x, y, data_type, gene_feats, eps, params)

    # 1) f32, general per-row gene_feats path.
    loss, recon_y, emb_y = fwd(x, y, data_type, gene_feats, eps, params)
    jax.block_until_ready((loss, recon_y, emb_y))
    assert jnp.allclose(loss, ref_loss, rtol=1e-5, atol=1e-5)
    assert jnp.allclose(recon_y, ref_recon, rtol=1e-5, atol=1e-5)
    assert jnp.allclose(emb_y, ref_emb, rtol=1e-5, atol=1e-5)

    # 2) bf16 MXU path + shared gene_feats (harness always feeds the same
    #    arange) vs a reference with matching casts.
    loss_bf, recon_bf, emb_bf = fwd(x, y, data_type, gene_feats, eps, params,
                                    matmul_dtype=jnp.bfloat16,
                                    shared_gene_feats=True)
    jax.block_until_ready((loss_bf, recon_bf, emb_bf))
    ref_bf_loss, ref_bf_recon, ref_bf_emb = corr_vae_forward_ref(
        x, y, data_type, gene_feats, eps, params, matmul_dtype=jnp.bfloat16)
    assert jnp.allclose(loss_bf, ref_bf_loss, rtol=1e-2, atol=1e-2)
    assert jnp.allclose(recon_bf, ref_bf_recon, rtol=1e-2, atol=1e-2)
    assert jnp.allclose(emb_bf, ref_bf_emb, rtol=1e-2, atol=1e-2)

    print("KERNEL_OK")
</pallas_src>

<mosaic_0001>
module attributes {stable_mosaic.version = 11 : i64} {
  func.func @_corr_vae_kernel(%arg0: i32, %arg1: memref<8x128xf32, #tpu.memory_space<vmem>>, %arg2: memref<8x128xf32, #tpu.memory_space<vmem>>, %arg3: memref<8x128xf32, #tpu.memory_space<vmem>>, %arg4: memref<8x8xf32, #tpu.memory_space<vmem>>, %arg5: memref<8x8xf32, #tpu.memory_space<vmem>>, %arg6: memref<128x32xf32, #tpu.memory_space<vmem>>, %arg7: memref<1x32xf32, #tpu.memory_space<vmem>>, %arg8: memref<32x16xf32, #tpu.memory_space<vmem>>, %arg9: memref<8x16xf32, #tpu.memory_space<vmem>>, %arg10: memref<1x16xf32, #tpu.memory_space<vmem>>, %arg11: memref<8x32xf32, #tpu.memory_space<vmem>>, %arg12: memref<1x32xf32, #tpu.memory_space<vmem>>, %arg13: memref<32x128xf32, #tpu.memory_space<vmem>>, %arg14: memref<1x128xf32, #tpu.memory_space<vmem>>, %arg15: memref<1x8x128xf32, #tpu.memory_space<vmem>>, %arg16: memref<8x128xf32, #tpu.memory_space<vmem>>, %arg17: memref<8x128xf32, #tpu.memory_space<vmem>>) attributes {dimension_semantics = [#tpu.dimension_semantics<parallel>], iteration_bounds = array<i64: 1>, scalar_prefetch = 0 : i64, scratch_operands = 0 : i64, tpu.core_type = #tpu.core_type<tc>, window_params = [{transform_indices = @transform_0, window_bounds = array<i64: 8, 128>}, {transform_indices = @transform_1, window_bounds = array<i64: 8, 128>}, {transform_indices = @transform_2, window_bounds = array<i64: 8, 128>}, {transform_indices = @transform_3, window_bounds = array<i64: 8, 8>}, {transform_indices = @transform_4, window_bounds = array<i64: 8, 8>}, {pipeline_mode = #tpu.pipeline_mode<synchronous>, transform_indices = @transform_5, window_bounds = array<i64: 128, 32>}, {pipeline_mode = #tpu.pipeline_mode<synchronous>, transform_indices = @transform_6, window_bounds = array<i64: 1, 32>}, {pipeline_mode = #tpu.pipeline_mode<synchronous>, transform_indices = @transform_7, window_bounds = array<i64: 32, 16>}, {pipeline_mode = #tpu.pipeline_mode<synchronous>, transform_indices = @transform_8, window_bounds = array<i64: 8, 16>}, {pipeline_mode = #tpu.pipeline_mode<synchronous>, transform_indices = @transform_9, window_bounds = array<i64: 1, 16>}, {pipeline_mode = #tpu.pipeline_mode<synchronous>, transform_indices = @transform_10, window_bounds = array<i64: 8, 32>}, {pipeline_mode = #tpu.pipeline_mode<synchronous>, transform_indices = @transform_11, window_bounds = array<i64: 1, 32>}, {pipeline_mode = #tpu.pipeline_mode<synchronous>, transform_indices = @transform_12, window_bounds = array<i64: 32, 128>}, {pipeline_mode = #tpu.pipeline_mode<synchronous>, transform_indices = @transform_13, window_bounds = array<i64: 1, 128>}, {transform_indices = @transform_14, window_bounds = array<i64: 1, 8, 128>}, {transform_indices = @transform_15, window_bounds = array<i64: 8, 128>}, {transform_indices = @transform_16, window_bounds = array<i64: 8, 128>}]} {
    %c0 = arith.constant 0 : index
    %c0_0 = arith.constant 0 : index
    %0 = vector.load %arg3[%c0, %c0_0] : memref<8x128xf32, #tpu.memory_space<vmem>>, vector<8x128xf32>
    %c0_1 = arith.constant 0 : index
    %c0_2 = arith.constant 0 : index
    %1 = vector.load %arg1[%c0_1, %c0_2] : memref<8x128xf32, #tpu.memory_space<vmem>>, vector<8x128xf32>
    %c0_3 = arith.constant 0 : index
    %c0_4 = arith.constant 0 : index
    %2 = vector.load %arg2[%c0_3, %c0_4] : memref<8x128xf32, #tpu.memory_space<vmem>>, vector<8x128xf32>
    %3 = arith.mulf %1, %0 : vector<8x128xf32>
    %c0_5 = arith.constant 0 : index
    %c0_6 = arith.constant 0 : index
    %4 = vector.load %arg6[%c0_5, %c0_6] : memref<128x32xf32, #tpu.memory_space<vmem>>, vector<128x32xf32>
    %cst = arith.constant dense<0.000000e+00> : vector<8x32xf32>
    %5 = tpu.matmul %3, %4, %cst {dimension_numbers = #tpu.dot_dimension_numbers<[1], [0], [0], [1], [0, 0, 1, 1], [], []>} : vector<8x128xf32>, vector<128x32xf32>, vector<8x32xf32> -> vector<8x32xf32>
    %c0_7 = arith.constant 0 : index
    %c0_8 = arith.constant 0 : index
    %6 = vector.load %arg7[%c0_7, %c0_8] : memref<1x32xf32, #tpu.memory_space<vmem>>, vector<1x32xf32>
    %7 = vector.broadcast %6 : vector<1x32xf32> to vector<8x32xf32>
    %8 = arith.addf %5, %7 : vector<8x32xf32>
    %cst_9 = arith.constant 0.000000e+00 : f32
    %9 = vector.broadcast %cst_9 : f32 to vector<8x32xf32>
    %10 = arith.maximumf %8, %9 : vector<8x32xf32>
    %c0_10 = arith.constant 0 : index
    %c0_11 = arith.constant 0 : index
    %11 = vector.load %arg8[%c0_10, %c0_11] : memref<32x16xf32, #tpu.memory_space<vmem>>, vector<32x16xf32>
    %cst_12 = arith.constant dense<0.000000e+00> : vector<8x16xf32>
    %12 = tpu.matmul %10, %11, %cst_12 {dimension_numbers = #tpu.dot_dimension_numbers<[1], [0], [0], [1], [0, 0, 1, 1], [], []>} : vector<8x32xf32>, vector<32x16xf32>, vector<8x16xf32> -> vector<8x16xf32>
    %c0_13 = arith.constant 0 : index
    %c0_14 = arith.constant 0 : index
    %13 = vector.load %arg4[%c0_13, %c0_14] : memref<8x8xf32, #tpu.memory_space<vmem>>, vector<8x8xf32>
    %c0_15 = arith.constant 0 : index
    %c0_16 = arith.constant 0 : index
    %14 = vector.load %arg9[%c0_15, %c0_16] : memref<8x16xf32, #tpu.memory_space<vmem>>, vector<8x16xf32>
    %cst_17 = arith.constant dense<0.000000e+00> : vector<8x16xf32>
    %15 = tpu.matmul %13, %14, %cst_17 {dimension_numbers = #tpu.dot_dimension_numbers<[1], [0], [0], [1], [0, 0, 1, 1], [], []>} : vector<8x8xf32>, vector<8x16xf32>, vector<8x16xf32> -> vector<8x16xf32>
    %16 = arith.addf %12, %15 : vector<8x16xf32>
    %c0_18 = arith.constant 0 : index
    %c0_19 = arith.constant 0 : index
    %17 = vector.load %arg10[%c0_18, %c0_19] : memref<1x16xf32, #tpu.memory_space<vmem>>, vector<1x16xf32>
    %18 = vector.broadcast %17 : vector<1x16xf32> to vector<8x16xf32>
    %19 = arith.addf %16, %18 : vector<8x16xf32>
    %20 = vector.extract_strided_slice %19 {offsets = [0, 0], sizes = [8, 8], strides = [1, 1]} : vector<8x16xf32> to vector<8x8xf32>
    %21 = vector.extract_strided_slice %19 {offsets = [0, 8], sizes = [8, 8], strides = [1, 1]} : vector<8x16xf32> to vector<8x8xf32>
    %cst_20 = arith.constant -1.000000e+01 : f32
    %cst_21 = arith.constant 1.000000e+01 : f32
    %22 = vector.broadcast %cst_20 : f32 to vector<8x8xf32>
    %23 = arith.maximumf %22, %21 : vector<8x8xf32>
    %24 = vector.broadcast %cst_21 : f32 to vector<8x8xf32>
    %25 = arith.minimumf %24, %23 : vector<8x8xf32>
    %cst_22 = arith.constant 5.000000e-01 : f32
    %26 = vector.broadcast %cst_22 : f32 to vector<8x8xf32>
    %27 = arith.mulf %26, %25 : vector<8x8xf32>
    %28 = math.exp %27 : vector<8x8xf32>
    %c0_23 = arith.constant 0 : index
    %c0_24 = arith.constant 0 : index
    %29 = vector.load %arg5[%c0_23, %c0_24] : memref<8x8xf32, #tpu.memory_space<vmem>>, vector<8x8xf32>
    %30 = arith.mulf %29, %28 : vector<8x8xf32>
    %31 = arith.addf %20, %30 : vector<8x8xf32>
    %c0_25 = arith.constant 0 : index
    %c0_26 = arith.constant 0 : index
    %32 = vector.load %arg11[%c0_25, %c0_26] : memref<8x32xf32, #tpu.memory_space<vmem>>, vector<8x32xf32>
    %cst_27 = arith.constant dense<0.000000e+00> : vector<8x32xf32>
    %33 = tpu.matmul %31, %32, %cst_27 {dimension_numbers = #tpu.dot_dimension_numbers<[1], [0], [0], [1], [0, 0, 1, 1], [], []>} : vector<8x8xf32>, vector<8x32xf32>, vector<8x32xf32> -> vector<8x32xf32>
    %c0_28 = arith.constant 0 : index
    %c0_29 = arith.constant 0 : index
    %34 = vector.load %arg12[%c0_28, %c0_29] : memref<1x32xf32, #tpu.memory_space<vmem>>, vector<1x32xf32>
    %35 = vector.broadcast %34 : vector<1x32xf32> to vector<8x32xf32>
    %36 = arith.addf %33, %35 : vector<8x32xf32>
    %cst_30 = arith.constant 0.000000e+00 : f32
    %37 = vector.broadcast %cst_30 : f32 to vector<8x32xf32>
    %38 = arith.maximumf %36, %37 : vector<8x32xf32>
    %c0_31 = arith.constant 0 : index
    %c0_32 = arith.constant 0 : index
    %39 = vector.load %arg13[%c0_31, %c0_32] : memref<32x128xf32, #tpu.memory_space<vmem>>, vector<32x128xf32>
    %cst_33 = arith.constant dense<0.000000e+00> : vector<8x128xf32>
    %40 = tpu.matmul %38, %39, %cst_33 {dimension_numbers = #tpu.dot_dimension_numbers<[1], [0], [0], [1], [0, 0, 1, 1], [], []>} : vector<8x32xf32>, vector<32x128xf32>, vector<8x128xf32> -> vector<8x128xf32>
    %c0_34 = arith.constant 0 : index
    %c0_35 = arith.constant 0 : index
    %41 = vector.load %arg14[%c0_34, %c0_35] : memref<1x128xf32, #tpu.memory_space<vmem>>, vector<1x128xf32>
    %42 = vector.broadcast %41 : vector<1x128xf32> to vector<8x128xf32>
    %43 = arith.addf %40, %42 : vector<8x128xf32>
    %44 = arith.mulf %43, %0 : vector<8x128xf32>
    %45 = arith.mulf %2, %0 : vector<8x128xf32>
    %c0_36 = arith.constant 0 : index
    %c0_37 = arith.constant 0 : index
    %46 = vector.load %arg16[%c0_36, %c0_37] : memref<8x128xf32, #tpu.memory_space<vmem>>, vector<8x128xf32>
    tpu.vector_store %arg16[%c0_36, %c0_37], %44 {strides = array<i32>} : memref<8x128xf32, #tpu.memory_space<vmem>>, vector<8x128xf32>,
    %c0_38 = arith.constant 0 : index
    %c0_39 = arith.constant 0 : index
    %47 = vector.load %arg17[%c0_38, %c0_39] : memref<8x128xf32, #tpu.memory_space<vmem>>, vector<8x128xf32>
    tpu.vector_store %arg17[%c0_38, %c0_39], %45 {strides = array<i32>} : memref<8x128xf32, #tpu.memory_space<vmem>>, vector<8x128xf32>,
    %48 = tpu.iota {dimensions = array<i32: 0>} : vector<8x1xi32>
    %c8_i32 = arith.constant 8 : i32
    %49 = arith.muli %arg0, %c8_i32 : i32
    %50 = vector.broadcast %49 : i32 to vector<8x1xi32>
    %51 = arith.addi %48, %50 : vector<8x1xi32>
    %c2_i32 = arith.constant 2 : i32
    %52 = vector.broadcast %c2_i32 : i32 to vector<8x1xi32>
    %53 = arith.cmpi slt, %51, %52 : vector<8x1xi32>
    %54 = arith.extui %53 : vector<8x1xi1> to vector<8x1xi32>
    %55 = arith.sitofp %54 : vector<8x1xi32> to vector<8x1xf32>
    %56 = arith.subf %44, %45 : vector<8x128xf32>
    %57 = vector.broadcast %55 : vector<8x1xf32> to vector<8x128xf32>
    %58 = arith.mulf %57, %56 : vector<8x128xf32>
    %59 = arith.mulf %58, %56 : vector<8x128xf32>
    %60 = vector.shape_cast %59 : vector<8x128xf32> to vector<1x8x128xf32>
    %cst_40 = arith.constant dense<0.000000e+00> : vector<1xf32>
    %61 = vector.multi_reduction <add>, %60, %cst_40 [1, 2] : vector<1x8x128xf32> to vector<1xf32>
    %62 = vector.shape_cast %61 : vector<1xf32> to vector<1x1x1xf32>
    %63 = vector.extract %62[0, 0, 0] : f32 from vector<1x1x1xf32>
    %64 = vector.broadcast %63 : f32 to vector<1x1xf32>
    %cst_41 = arith.constant 1.000000e+00 : f32
    %65 = vector.broadcast %cst_41 : f32 to vector<8x8xf32>
    %66 = arith.addf %65, %25 : vector<8x8xf32>
    %67 = arith.mulf %20, %20 : vector<8x8xf32>
    %68 = arith.subf %66, %67 : vector<8x8xf32>
    %69 = arith.mulf %28, %28 : vector<8x8xf32>
    %70 = arith.subf %68, %69 : vector<8x8xf32>
    %71 = vector.broadcast %55 : vector<8x1xf32> to vector<8x8xf32>
    %72 = arith.mulf %71, %70 : vector<8x8xf32>
    %73 = vector.shape_cast %72 : vector<8x8xf32> to vector<1x8x8xf32>
    %cst_42 = arith.constant dense<0.000000e+00> : vector<1xf32>
    %74 = vector.multi_reduction <add>, %73, %cst_42 [1, 2] : vector<1x8x8xf32> to vector<1xf32>
    %75 = vector.shape_cast %74 : vector<1xf32> to vector<1x1x1xf32>
    %76 = vector.extract %75[0, 0, 0] : f32 from vector<1x1x1xf32>
    %77 = vector.broadcast %76 : f32 to vector<1x1xf32>
    %cst_43 = arith.constant -5.000000e-01 : f32
    %78 = vector.broadcast %cst_43 : f32 to vector<1x1xf32>
    %79 = arith.mulf %78, %77 : vector<1x1xf32>
    %80 = tpu.iota {dimensions = array<i32: 1>} : vector<8x128xi32>
    %c0_i32 = arith.constant 0 : i32
    %81 = vector.broadcast %c0_i32 : i32 to vector<8x128xi32>
    %82 = arith.cmpi eq, %80, %81 : vector<8x128xi32>
    %c1_i32 = arith.constant 1 : i32
    %83 = vector.broadcast %c1_i32 : i32 to vector<8x128xi32>
    %84 = arith.cmpi eq, %80, %83 : vector<8x128xi32>
    %cst_44 = arith.constant 0.000000e+00 : f32
    %85 = vector.shape_cast %79 : vector<1x1xf32> to vector<1x1xf32>
    %86 = vector.broadcast %85 : vector<1x1xf32> to vector<8x128xf32>
    %87 = vector.broadcast %cst_44 : f32 to vector<8x128xf32>
    %88 = arith.select %84, %86, %87 : vector<8x128xi1>, vector<8x128xf32>
    %89 = vector.shape_cast %64 : vector<1x1xf32> to vector<1x1xf32>
    %90 = vector.broadcast %89 : vector<1x1xf32> to vector<8x128xf32>
    %91 = arith.select %82, %90, %88 : vector<8x128xi1>, vector<8x128xf32>
    %c0_45 = arith.constant 0 : index
    %c0_46 = arith.constant 0 : index
    %c0_47 = arith.constant 0 : index
    %92 = vector.load %arg15[%c0_45, %c0_46, %c0_47] : memref<1x8x128xf32, #tpu.memory_space<vmem>>, vector<1x8x128xf32>
    %93 = vector.shape_cast %92 : vector<1x8x128xf32> to vector<8x128xf32>
    %94 = vector.shape_cast %91 : vector<8x128xf32> to vector<1x8x128xf32>
    tpu.vector_store %arg15[%c0_45, %c0_46, %c0_47], %94 {strides = array<i32>} : memref<1x8x128xf32, #tpu.memory_space<vmem>>, vector<1x8x128xf32>,
    return
  }
  func.func @transform_0(%arg0: i32) -> (i32, i32) {
    %c0_i32 = arith.constant 0 : i32
    %c0_i32_0 = arith.constant 0 : i32
    return %arg0, %c0_i32 : i32, i32
  }
  func.func @transform_1(%arg0: i32) -> (i32, i32) {
    %c0_i32 = arith.constant 0 : i32
    %c0_i32_0 = arith.constant 0 : i32
    return %arg0, %c0_i32 : i32, i32
  }
  func.func @transform_2(%arg0: i32) -> (i32, i32) {
    %c0_i32 = arith.constant 0 : i32
    %c0_i32_0 = arith.constant 0 : i32
    return %arg0, %c0_i32 : i32, i32
  }
  func.func @transform_3(%arg0: i32) -> (i32, i32) {
    %c0_i32 = arith.constant 0 : i32
    %c0_i32_0 = arith.constant 0 : i32
    return %arg0, %c0_i32 : i32, i32
  }
  func.func @transform_4(%arg0: i32) -> (i32, i32) {
    %c0_i32 = arith.constant 0 : i32
    %c0_i32_0 = arith.constant 0 : i32
    return %arg0, %c0_i32 : i32, i32
  }
  func.func @transform_5(%arg0: i32) -> (i32, i32) {
    %c0_i32 = arith.constant 0 : i32
    %c0_i32_0 = arith.constant 0 : i32
    %c0_i32_1 = arith.constant 0 : i32
    return %c0_i32, %c0_i32_0 : i32, i32
  }
  func.func @transform_6(%arg0: i32) -> (i32, i32) {
    %c0_i32 = arith.constant 0 : i32
    %c0_i32_0 = arith.constant 0 : i32
    %c0_i32_1 = arith.constant 0 : i32
    return %c0_i32, %c0_i32_0 : i32, i32
  }
  func.func @transform_7(%arg0: i32) -> (i32, i32) {
    %c0_i32 = arith.constant 0 : i32
    %c0_i32_0 = arith.constant 0 : i32
    %c0_i32_1 = arith.constant 0 : i32
    return %c0_i32, %c0_i32_0 : i32, i32
  }
  func.func @transform_8(%arg0: i32) -> (i32, i32) {
    %c0_i32 = arith.constant 0 : i32
    %c0_i32_0 = arith.constant 0 : i32
    %c0_i32_1 = arith.constant 0 : i32
    return %c0_i32, %c0_i32_0 : i32, i32
  }
  func.func @transform_9(%arg0: i32) -> (i32, i32) {
    %c0_i32 = arith.constant 0 : i32
    %c0_i32_0 = arith.constant 0 : i32
    %c0_i32_1 = arith.constant 0 : i32
    return %c0_i32, %c0_i32_0 : i32, i32
  }
  func.func @transform_10(%arg0: i32) -> (i32, i32) {
    %c0_i32 = arith.constant 0 : i32
    %c0_i32_0 = arith.constant 0 : i32
    %c0_i32_1 = arith.constant 0 : i32
    return %c0_i32, %c0_i32_0 : i32, i32
  }
  func.func @transform_11(%arg0: i32) -> (i32, i32) {
    %c0_i32 = arith.constant 0 : i32
    %c0_i32_0 = arith.constant 0 : i32
    %c0_i32_1 = arith.constant 0 : i32
    return %c0_i32, %c0_i32_0 : i32, i32
  }
  func.func @transform_12(%arg0: i32) -> (i32, i32) {
    %c0_i32 = arith.constant 0 : i32
    %c0_i32_0 = arith.constant 0 : i32
    %c0_i32_1 = arith.constant 0 : i32
    return %c0_i32, %c0_i32_0 : i32, i32
  }
  func.func @transform_13(%arg0: i32) -> (i32, i32) {
    %c0_i32 = arith.constant 0 : i32
    %c0_i32_0 = arith.constant 0 : i32
    %c0_i32_1 = arith.constant 0 : i32
    return %c0_i32, %c0_i32_0 : i32, i32
  }
  func.func @transform_14(%arg0: i32) -> (i32, i32, i32) {
    %c0_i32 = arith.constant 0 : i32
    %c0_i32_0 = arith.constant 0 : i32
    %c0_i32_1 = arith.constant 0 : i32
    return %arg0, %c0_i32, %c0_i32_0 : i32, i32, i32
  }
  func.func @transform_15(%arg0: i32) -> (i32, i32) {
    %c0_i32 = arith.constant 0 : i32
    %c0_i32_0 = arith.constant 0 : i32
    return %arg0, %c0_i32 : i32, i32
  }
  func.func @transform_16(%arg0: i32) -> (i32, i32) {
    %c0_i32 = arith.constant 0 : i32
    %c0_i32_0 = arith.constant 0 : i32
    return %arg0, %c0_i32 : i32, i32
  }
}

</mosaic_0001>

<llo_original>
// kernel: corr_vae_forward.1
$region0: #{corr_vae_forward.1}
  #allocation0 [shape = 'u32[]', space=smem, size = 0x4, offset = 0x4, fixed_abs, tag = 'smem constant byte address 0x4 - core index']
  #allocation1 [shape = 'u32[72,128]{1,0:T(1,128)}', space=vmem, size = 0x9000, scoped, tag = 'internal scratch']
  %s0 = inlined_call_operand.vmem [shape: f32[8,128], index: 0, kind: input, shape index: {}]
  %s1 = inlined_call_operand.vmem [shape: f32[8,128], index: 1, kind: input, shape index: {}]
  %s2 = inlined_call_operand.vmem [shape: f32[8,128], index: 2, kind: input, shape index: {}]
  %s3 = inlined_call_operand.vmem [shape: f32[8,8], index: 3, kind: input, shape index: {}]
  %s4 = inlined_call_operand.vmem [shape: f32[8,8], index: 4, kind: input, shape index: {}]
  %s5 = inlined_call_operand.vmem [shape: f32[128,32], index: 5, kind: input, shape index: {}]
  %s6 = inlined_call_operand.vmem [shape: f32[1,32], index: 6, kind: input, shape index: {}]
  %s7 = inlined_call_operand.vmem [shape: f32[32,16], index: 7, kind: input, shape index: {}]
  %s8 = inlined_call_operand.vmem [shape: f32[8,16], index: 8, kind: input, shape index: {}]
  %s9 = inlined_call_operand.vmem [shape: f32[1,16], index: 9, kind: input, shape index: {}]
  %s10 = inlined_call_operand.vmem [shape: f32[8,32], index: 10, kind: input, shape index: {}]
  %s11 = inlined_call_operand.vmem [shape: f32[1,32], index: 11, kind: input, shape index: {}]
  %s12 = inlined_call_operand.vmem [shape: f32[32,128], index: 12, kind: input, shape index: {}]
  %s13 = inlined_call_operand.vmem [shape: f32[1,128], index: 13, kind: input, shape index: {}]
  %s14 = inlined_call_operand.vmem [shape: f32[1,8,128], index: 14, kind: output, shape index: {0}]
  %s15 = inlined_call_operand.vmem [shape: f32[8,128], index: 15, kind: output, shape index: {1}]
  %s16 = inlined_call_operand.vmem [shape: f32[8,128], index: 16, kind: output, shape index: {2}]
  %17 = xla_tuple %s14, %s15, %s16
  %s18 = sld [smem:[#allocation0]]
  $region82: #{corr_vae_forward.1} parent=0
    _
  %s20 = ssub.s32 1, %s18
  %s21 = scalar_select 0, %s20, %s18
  // Predicated region
  $region2: #{corr_vae_forward.1} parent=0 // pred_check
    _
  $region3: #{corr_vae_forward.1} parent=0 // pred_check_branch
    %23 = sbr.rel (0) target = $region5
  $region4: #{corr_vae_forward.1} parent=0 // pred_region
    _
  $region5: #{corr_vae_forward.1} parent=0 // pred_fallthru
    _
  // Predicated region
  $region6: #{corr_vae_forward.1} parent=0 // pred_check
    _
  $region7: #{corr_vae_forward.1} parent=0 // pred_check_branch
    %25 = sbr.rel (0) target = $region9
  $region8: #{corr_vae_forward.1} parent=0 // pred_region
    _
  $region9: #{corr_vae_forward.1} parent=0 // pred_fallthru
    _
  // Predicated region
  $region10: #{corr_vae_forward.1} parent=0 // pred_check
    _
  $region11: #{corr_vae_forward.1} parent=0 // pred_check_branch
    %27 = sbr.rel (0) target = $region13
  $region12: #{corr_vae_forward.1} parent=0 // pred_region
    _
  $region13: #{corr_vae_forward.1} parent=0 // pred_fallthru
    _
  // Predicated region
  $region14: #{corr_vae_forward.1} parent=0 // pred_check
    _
  $region15: #{corr_vae_forward.1} parent=0 // pred_check_branch
    %29 = sbr.rel (0) target = $region17
  $region16: #{corr_vae_forward.1} parent=0 // pred_region
    _
  $region17: #{corr_vae_forward.1} parent=0 // pred_fallthru
    _
  // Predicated region
  $region18: #{corr_vae_forward.1} parent=0 // pred_check
    _
  $region19: #{corr_vae_forward.1} parent=0 // pred_check_branch
    %31 = sbr.rel (0) target = $region21
  $region20: #{corr_vae_forward.1} parent=0 // pred_region
    _
  $region21: #{corr_vae_forward.1} parent=0 // pred_fallthru
    _
  // Predicated region
  $region22: #{corr_vae_forward.1} parent=0 // pred_check
    _
  $region23: #{corr_vae_forward.1} parent=0 // pred_check_branch
    %33 = sbr.rel (0) target = $region25
  $region24: #{corr_vae_forward.1} parent=0 // pred_region
    _
  $region25: #{corr_vae_forward.1} parent=0 // pred_fallthru
    _
  // Predicated region
  $region26: #{corr_vae_forward.1} parent=0 // pred_check
    _
  $region27: #{corr_vae_forward.1} parent=0 // pred_check_branch
    %35 = sbr.rel (0) target = $region29
  $region28: #{corr_vae_forward.1} parent=0 // pred_region
    _
  $region29: #{corr_vae_forward.1} parent=0 // pred_fallthru
    _
  // Predicated region
  $region30: #{corr_vae_forward.1} parent=0 // pred_check
    _
  $region31: #{corr_vae_forward.1} parent=0 // pred_check_branch
    %37 = sbr.rel (0) target = $region33
  $region32: #{corr_vae_forward.1} parent=0 // pred_region
    _
  $region33: #{corr_vae_forward.1} parent=0 // pred_fallthru
    _
  // Predicated region
  $region34: #{corr_vae_forward.1} parent=0 // pred_check
    _
  $region35: #{corr_vae_forward.1} parent=0 // pred_check_branch
    %39 = sbr.rel (0) target = $region37
  $region36: #{corr_vae_forward.1} parent=0 // pred_region
    _
  $region37: #{corr_vae_forward.1} parent=0 // pred_fallthru
    _
  // Predicated region
  $region38: #{corr_vae_forward.1} parent=0 // pred_check
    _
  $region39: #{corr_vae_forward.1} parent=0 // pred_check_branch
    %41 = sbr.rel (0) target = $region41
  $region40: #{corr_vae_forward.1} parent=0 // pred_region
    _
  $region41: #{corr_vae_forward.1} parent=0 // pred_fallthru
    _
  // Predicated region
  $region42: #{corr_vae_forward.1} parent=0 // pred_check
    _
  $region43: #{corr_vae_forward.1} parent=0 // pred_check_branch
    %43 = sbr.rel (0) target = $region45
  $region44: #{corr_vae_forward.1} parent=0 // pred_region
    _
  $region45: #{corr_vae_forward.1} parent=0 // pred_fallthru
    _
  // Predicated region
  $region46: #{corr_vae_forward.1} parent=0 // pred_check
    _
  $region47: #{corr_vae_forward.1} parent=0 // pred_check_branch
    %45 = sbr.rel (0) target = $region49
  $region48: #{corr_vae_forward.1} parent=0 // pred_region
    _
  $region49: #{corr_vae_forward.1} parent=0 // pred_fallthru
    _
  // Predicated region
  $region50: #{corr_vae_forward.1} parent=0 // pred_check
    _
  $region51: #{corr_vae_forward.1} parent=0 // pred_check_branch
    %47 = sbr.rel (0) target = $region53
  $region52: #{corr_vae_forward.1} parent=0 // pred_region
    _
  $region53: #{corr_vae_forward.1} parent=0 // pred_fallthru
    _
  // Predicated region
  $region54: #{corr_vae_forward.1} parent=0 // pred_check
    _
  $region55: #{corr_vae_forward.1} parent=0 // pred_check_branch
    %49 = sbr.rel (0) target = $region57
  $region56: #{corr_vae_forward.1} parent=0 // pred_region
    _
  $region57: #{corr_vae_forward.1} parent=0 // pred_fallthru
    _
  %v50 = vld [vmem:[%s2] sm:$0xff]
  %v51 = vld [vmem:[%s0] sm:$0xff]
  %v52 = vld [vmem:[%s1] sm:$0xff]
  %v53 = vmul.f32 %v51, %v50
  %v54 = vld [vmem:[%s5] sm:$0xff]
  %v55 = vld [vmem:[%s5 + $0x8] sm:$0xff]
  %v56 = vld [vmem:[%s5 + $0x10] sm:$0xff]
  %v57 = vld [vmem:[%s5 + $0x18] sm:$0xff]
  %v58 = vld [vmem:[%s5 + $0x20] sm:$0xff]
  %v59 = vld [vmem:[%s5 + $0x28] sm:$0xff]
  %v60 = vld [vmem:[%s5 + $0x30] sm:$0xff]
  %v61 = vld [vmem:[%s5 + $0x38] sm:$0xff]
  %v62 = vld [vmem:[%s5 + $0x40] sm:$0xff]
  %v63 = vld [vmem:[%s5 + $0x48] sm:$0xff]
  %v64 = vld [vmem:[%s5 + $0x50] sm:$0xff]
  %v65 = vld [vmem:[%s5 + $0x58] sm:$0xff]
  %v66 = vld [vmem:[%s5 + $0x60] sm:$0xff]
  %v67 = vld [vmem:[%s5 + $0x68] sm:$0xff]
  %v68 = vld [vmem:[%s5 + $0x70] sm:$0xff]
  %v69 = vld [vmem:[%s5 + $0x78] sm:$0xff]
  %v70 = vld [vmem:[%s6] sm:$0x1]
  %v72 = vperm.slane %v70, 0
  %74 = vmatpush.msra.mxu0 %v69
  %75 = vmatpush.msra.mxu0 %v68
  %76 = vmatpush.msra.mxu0 %v67
  %77 = vmatpush.msra.mxu0 %v66
  %78 = vmatpush.msra.mxu0 %v65
  %79 = vmatpush.msra.mxu0 %v64
  %80 = vmatpush.msra.mxu0 %v63
  %81 = vmatpush.msra.mxu0 %v62
  %82 = vmatpush.msra.mxu0 %v61
  %83 = vmatpush.msra.mxu0 %v60
  %84 = vmatpush.msra.mxu0 %v59
  %85 = vmatpush.msra.mxu0 %v58
  %86 = vmatpush.msra.mxu0 %v57
  %87 = vmatpush.msra.mxu0 %v56
  %88 = vmatpush.msra.mxu0 %v55
  %89 = vmatpush.msra.mxu0 %v54
  %90 = vmatmul.f32.gmra.mxu0 %v53
  %v91 = vpop.f32.mrf.mxu0
  %v92 = vadd.f32 %v72, %v91
  %93 = vdwg.mxu0
  %v94 = vmax.f32 %v92, 0.0
  %v95 = vld [vmem:[%s7] sm:$0xff]
  %v96 = vld [vmem:[%s7 + $0x8] sm:$0xff]
  %v97 = vld [vmem:[%s7 + $0x10] sm:$0xff]
  %v98 = vld [vmem:[%s7 + $0x18] sm:$0xff]
  %v99 = vld [vmem:[%s3] sm:$0xff]
  %v100 = vld [vmem:[%s8] sm:$0xff]
  %vm101 = vcmask 64512
  %v103 = vsel %vm101, %v99, 0
  %105 = vmatpush.msra.mxu0 0.0
  %106 = vmatpush.msra.mxu0 0.0
  %107 = vmatpush.msra.mxu0 0.0
  %108 = vmatpush.msra.mxu0 0.0
  %109 = vmatpush.msra.mxu0 0.0
  %110 = vmatpush.msra.mxu0 0.0
  %111 = vmatpush.msra.mxu0 0.0
  %112 = vmatpush.msra.mxu0 0.0
  %113 = vmatpush.msra.mxu0 0.0
  %114 = vmatpush.msra.mxu0 0.0
  %115 = vmatpush.msra.mxu0 0.0
  %116 = vmatpush.msra.mxu0 0.0
  %117 = vmatpush.msra.mxu0 0.0
  %118 = vmatpush.msra.mxu0 0.0
  %119 = vmatpush.msra.mxu0 0.0
  %120 = vmatpush.msra.mxu0 %v100
  %121 = vmatmul.f32.gmra.mxu0 %v103
  %v122 = vpop.f32.mrf.mxu0
  %v123 = vadd.f32 0.0, %v122
  %124 = vdwg.mxu0
  %vm125 = vcmask 261120
  %v127 = vsel %vm125, %v94, 0
  %129 = vmatpush.msra.mxu0 0.0
  %130 = vmatpush.msra.mxu0 0.0
  %131 = vmatpush.msra.mxu0 0.0
  %132 = vmatpush.msra.mxu0 0.0
  %133 = vmatpush.msra.mxu0 0.0
  %134 = vmatpush.msra.mxu0 0.0
  %135 = vmatpush.msra.mxu0 0.0
  %136 = vmatpush.msra.mxu0 0.0
  %137 = vmatpush.msra.mxu0 0.0
  %138 = vmatpush.msra.mxu0 0.0
  %139 = vmatpush.msra.mxu0 0.0
  %140 = vmatpush.msra.mxu0 0.0
  %141 = vmatpush.msra.mxu0 %v98
  %142 = vmatpush.msra.mxu0 %v97
  %143 = vmatpush.msra.mxu0 %v96
  %144 = vmatpush.msra.mxu0 %v95
  %145 = vmatmul.f32.gmra.mxu0 %v127
  %v146 = vpop.f32.mrf.mxu0
  %v147 = vadd.f32 %v123, %v146
  %148 = vdwg.mxu0
  %v149 = vld [vmem:[%s9] sm:$0x1]
  %v151 = vperm.slane %v149, 0
  %v153 = vadd.f32 %v147, %v151
  %v154 = vmax.f32 %v153, -10.0
  %v155 = vmin.f32 %v154, 10.0
  %v156 = vmul.f32 %v155, 0.5
  %v157 = vmul.f32 %v156, 1.442695
  %v158 = vpow.pop %v157
  %v159 = vld [vmem:[%s4] sm:$0xff]
  %161 = vrot.lane.b32.xlu0 %v158, 120
  %v162 = vpop.permute.xlu0 %161
  %v164 = vmul.f32 %v159, %v162
  %v165 = vadd.f32 %v153, %v164
  %v166 = vld [vmem:[%s10] sm:$0xff]
  %v167 = vld [vmem:[%s11] sm:$0x1]
  %v169 = vperm.slane %v167, 0
  %v172 = vsel %vm101, %v165, 0
  %174 = vmatpush.msra.mxu0 0.0
  %175 = vmatpush.msra.mxu0 0.0
  %176 = vmatpush.msra.mxu0 0.0
  %177 = vmatpush.msra.mxu0 0.0
  %178 = vmatpush.msra.mxu0 0.0
  %179 = vmatpush.msra.mxu0 0.0
  %180 = vmatpush.msra.mxu0 0.0
  %181 = vmatpush.msra.mxu0 0.0
  %182 = vmatpush.msra.mxu0 0.0
  %183 = vmatpush.msra.mxu0 0.0
  %184 = vmatpush.msra.mxu0 0.0
  %185 = vmatpush.msra.mxu0 0.0
  %186 = vmatpush.msra.mxu0 0.0
  %187 = vmatpush.msra.mxu0 0.0
  %188 = vmatpush.msra.mxu0 0.0
  %189 = vmatpush.msra.mxu0 %v166
  %190 = vmatmul.f32.gmra.mxu0 %v172
  %v191 = vpop.f32.mrf.mxu0
  %v192 = vadd.f32 %v169, %v191
  %193 = vdwg.mxu0
  %v194 = vmax.f32 %v192, 0.0
  %v195 = vld [vmem:[%s12] sm:$0xff]
  %v196 = vld [vmem:[%s12 + $0x8] sm:$0xff]
  %v197 = vld [vmem:[%s12 + $0x10] sm:$0xff]
  %v198 = vld [vmem:[%s12 + $0x18] sm:$0xff]
  %v199 = vld [vmem:[%s13] sm:$0x1]
  %v201 = vperm.slane %v199, 0
  %v204 = vsel %vm125, %v194, 0
  %206 = vmatpush.msra.mxu0 0.0
  %207 = vmatpush.msra.mxu0 0.0
  %208 = vmatpush.msra.mxu0 0.0
  %209 = vmatpush.msra.mxu0 0.0
  %210 = vmatpush.msra.mxu0 0.0
  %211 = vmatpush.msra.mxu0 0.0
  %212 = vmatpush.msra.mxu0 0.0
  %213 = vmatpush.msra.mxu0 0.0
  %214 = vmatpush.msra.mxu0 0.0
  %215 = vmatpush.msra.mxu0 0.0
  %216 = vmatpush.msra.mxu0 0.0
  %217 = vmatpush.msra.mxu0 0.0
  %218 = vmatpush.msra.mxu0 %v198
  %219 = vmatpush.msra.mxu0 %v197
  %220 = vmatpush.msra.mxu0 %v196
  %221 = vmatpush.msra.mxu0 %v195
  %222 = vmatmul.f32.gmra.mxu0 %v204
  %v223 = vpop.f32.mrf.mxu0
  %v224 = vadd.f32 %v201, %v223
  %225 = vdwg.mxu0
  %v226 = vmul.f32 %v224, %v50
  %v227 = vmul.f32 %v52, %v50
  %228 = vst [vmem:[%s15] sm:$0xff] %v226
  %229 = vst [vmem:[%s16] sm:$0xff] %v227
  %v230 = vlaneseq
  %v231 = vshrl.u32 %v230, 7
  %s232 = smul.u32 0, 8
  %v233 = vstv %s232
  %v234 = vadd.s32 %v231, %v233
  %vm235 = vcmp.lt.s32.totalorder %v234, 2
  %v236 = vsel %vm235, 1, 0
  %v237 = vcvt.s32.f32 %v236
  %v238 = vsub.f32 %v226, %v227
  %v239 = vmul.f32 %v237, %v238
  %v240 = vmul.f32 %v239, %v238
  %241 = vadd.xlane.f32.xlu0 %v240
  %v242 = vpop.xlane.xlu0 %241
  %v243 = vrot.slane %v242, 4
  %v244 = vadd.f32 %v242, %v243
  %v245 = vrot.slane %v244, 2
  %v246 = vadd.f32 %v244, %v245
  %v247 = vrot.slane %v246, 1
  %v248 = vadd.f32 %v246, %v247
  %s249 = vtos %v248
  %v250 = vadd.f32 %v155, 1.0
  %v251 = vmul.f32 %v153, %v153
  %253 = vrot.lane.b32.xlu0 %v251, 8
  %v254 = vpop.permute.xlu0 %253
  %v256 = vsub.f32 %v250, %v254
  %v257 = vmul.f32 %v158, %v158
  %v258 = vsub.f32 %v256, %v257
  %v259 = vmul.f32 %v237, %v258
  %261 = vrot.lane.b32.xlu0 %v259, 120
  %v262 = vpop.permute.xlu0 %261
  %v264 = vsel %vm101, %v262, 0.0
  %265 = vadd.xlane.f32.xlu0 %v264
  %v266 = vpop.xlane.xlu0 %265
  %v267 = vrot.slane %v266, 4
  %v268 = vadd.f32 %v266, %v267
  %v269 = vrot.slane %v268, 2
  %v270 = vadd.f32 %v268, %v269
  %v271 = vrot.slane %v270, 1
  %v272 = vadd.f32 %v270, %v271
  %s273 = vtos %v272
  %v274 = vstv %s273
  %v275 = vmul.f32 %v274, -0.5
  %v276 = vlaneseq
  %v277 = vand.u32 %v276, 127
  %vm278 = vcmp.eq.s32.totalorder %v277, 0
  %vm279 = vcmp.eq.s32.totalorder %v277, 1
  %v280 = vsel %vm279, %v275, 0.0
  %v281 = vstv %s249
  %v282 = vsel %vm278, %v281, %v280
  %283 = vst [vmem:[%s14] sm:$0xff] %v282
  // Predicated region
  $region58: #{corr_vae_forward.1} parent=0 // pred_check
    _
  $region59: #{corr_vae_forward.1} parent=0 // pred_check_branch
    %285 = sbr.rel (0) target = $region61
  $region60: #{corr_vae_forward.1} parent=0 // pred_region
    _
  $region61: #{corr_vae_forward.1} parent=0 // pred_fallthru
    _
  // Predicated region
  $region62: #{corr_vae_forward.1} parent=0 // pred_check
    _
  $region63: #{corr_vae_forward.1} parent=0 // pred_check_branch
    %287 = sbr.rel (0) target = $region65
  $region64: #{corr_vae_forward.1} parent=0 // pred_region
    _
  $region65: #{corr_vae_forward.1} parent=0 // pred_fallthru
    _
  // Predicated region
  $region66: #{corr_vae_forward.1} parent=0 // pred_check
    _
  $region67: #{corr_vae_forward.1} parent=0 // pred_check_branch
    %289 = sbr.rel (0) target = $region69
  $region68: #{corr_vae_forward.1} parent=0 // pred_region
    _
  $region69: #{corr_vae_forward.1} parent=0 // pred_fallthru
    _
  // Predicated region
  $region70: #{corr_vae_forward.1} parent=0 // pred_check
    _
  $region71: #{corr_vae_forward.1} parent=0 // pred_check_branch
    %291 = sbr.rel (0) target = $region73
  $region72: #{corr_vae_forward.1} parent=0 // pred_region
    _
  $region73: #{corr_vae_forward.1} parent=0 // pred_fallthru
    _
  // Predicated region
  $region74: #{corr_vae_forward.1} parent=0 // pred_check
    _
  $region75: #{corr_vae_forward.1} parent=0 // pred_check_branch
    %293 = sbr.rel (0) target = $region77
  $region76: #{corr_vae_forward.1} parent=0 // pred_region
    _
  $region77: #{corr_vae_forward.1} parent=0 // pred_fallthru
    _
  // Predicated region
  $region78: #{corr_vae_forward.1} parent=0 // pred_check
    _
  $region79: #{corr_vae_forward.1} parent=0 // pred_check_branch
    %295 = sbr.rel (0) target = $region81
  $region80: #{corr_vae_forward.1} parent=0 // pred_region
    _
  $region81: #{corr_vae_forward.1} parent=0 // pred_fallthru
    _

</llo_original>
